<compile_context>
chip_gen: v7x
topology: tpu7x:2x2x1
jax: 0.10.0
libtpu: 0.0.40
codegen_flags: <defaults>
</compile_context>

<pallas_src>
import jax
import jax.numpy as jnp
from jax import lax
from jax.experimental import pallas as pl
from jax.experimental.pallas import tpu as pltpu


def gravity_kernel(gamma_ref, o_ref, d_ref, c_ref, q_ref):
    tm, n = c_ref.shape

    # Global row index of this tile (so the diagonal lands in the right place).
    row0 = pl.program_id(0) * tm
    row = row0 + lax.broadcasted_iota(jnp.int32, (tm, n), 0)
    col = lax.broadcasted_iota(jnp.int32, (tm, n), 1)
    offdiag = row != col                                    # (TILE_M, N) bool

    gamma = jnp.clip(gamma_ref[0, 0], 0.9, 1.0)             # SMEM scalar
    c = c_ref[...]                                          # (TILE_M, N) f32

    # Single select.  Off-diagonal: c ** (-gamma) via exp/log (c > 0 there).
    # Diagonal: 0, matching (c+1e-6)**(-gamma) * (1-eye).  The where() discards
    # any inf/NaN the diagonal log might produce.
    # TODO(synk): optional v7x fast path — when clamp(gamma)==1.0 branch to
    # f = 1/c (halves EUP work); and the mask could be shrunk to an
    # O(TILE_M^2) diagonal-window zeroing when TILE_M is lane-aligned.
    f = jnp.where(offdiag, jnp.exp(-gamma * jnp.log(c)), 0.0)

    # D_j * f_cij, broadcast over rows.
    df = d_ref[...] * f                                      # (TILE_M, N)

    # Row-wise normalization; fold O_i and 1/denominator into one (TILE_M,1)
    # column so only a single full-tile multiply remains.
    denom = jnp.sum(df, axis=-1, keepdims=True)              # (TILE_M, 1)
    scale = o_ref[...] * pl.reciprocal(denom, approx=False)
    q_ref[...] = (df * scale).astype(q_ref.dtype)


def _round_up(x: int, m: int) -> int:
    return ((x + m - 1) // m) * m


def _pick_tile_m(n_pad: int) -> int:
    """Row-tile size for a (TILE_M, n_pad) f32 block.

    n_pad is a multiple of 128.  Caps one tile at ~2 MiB (so double-buffered
    in+out block traffic is <=8 MiB -> fits v5e's 16 MiB scoped default and
    leaves headroom for elementwise temporaries on v7x's 64 MiB), keeps TILE_M
    a multiple of 8 dividing n_pad, and guarantees >=2 (>=4) row tiles so the
    pipeline and v7x megacore sharding engage.
    """
    tile_budget = 2 * 1024 * 1024                       # bytes per f32 tile
    tm = (tile_budget // (n_pad * 4)) // 8 * 8
    tm = max(8, min(tm, n_pad))
    if n_pad >= 512:
        tm = min(tm, n_pad // 4)                        # >= 4 grid steps
    elif n_pad >= 256:
        tm = min(tm, n_pad // 2)                        # >= 2 grid steps
    while n_pad % tm != 0:                              # both are multiples of 8
        tm -= 8
    return max(tm, 8)


def gravity_model(O_i, D_j, c_ij, gamma, out_dtype=jnp.float32):
    """O_i: (N,1), D_j: (N,), c_ij: (N,N), gamma: scalar -> q_ij: (N,N)."""
    n = c_ij.shape[0]
    n_pad = _round_up(n, 128)                           # lanes (and sublanes)
    tm = _pick_tile_m(n_pad)

    gamma_arr = jnp.asarray(gamma, jnp.float32).reshape(1, 1)
    o_col = jnp.asarray(O_i, jnp.float32).reshape(n, 1)
    d_row = jnp.asarray(D_j, jnp.float32).reshape(1, n)
    c = jnp.asarray(c_ij, jnp.float32)

    if n_pad != n:
        pad = n_pad - n
        # D padded with zeros -> padded columns contribute 0 to df and denom.
        # c padded with 1.0 -> log stays finite.  Padded *rows* may yield NaN
        # (0/0) but are sliced off below; no cross-row reductions exist.
        o_col = jnp.pad(o_col, ((0, pad), (0, 0)))
        d_row = jnp.pad(d_row, ((0, 0), (0, pad)))
        c = jnp.pad(c, ((0, pad), (0, pad)), constant_values=1.0)

    tile_bytes = tm * n_pad * 4
    # 2x double-buffered (in + out) blocks + generous headroom for elementwise
    # temporaries; capped so it stays safe on v7x's 64 MiB physical VMEM.
    vmem_limit = min(40 * 1024 * 1024,
                     max(16 * 1024 * 1024, 12 * tile_bytes + (2 << 20)))

    cost = pl.CostEstimate(
        flops=5 * n_pad * n_pad,               # select/mul/sum/scale VPU work
        transcendentals=2 * n_pad * n_pad,     # log + exp per element
        bytes_accessed=(n_pad * n_pad * 4                       # c read
                        + n_pad * n_pad * jnp.dtype(out_dtype).itemsize
                        + 3 * n_pad * 4),
    )

    q = pl.pallas_call(
        gravity_kernel,
        out_shape=jax.ShapeDtypeStruct((n_pad, n_pad), out_dtype),
        grid=(pl.cdiv(n_pad, tm),),
        in_specs=[
            pl.BlockSpec(memory_space=pltpu.MemorySpace.SMEM),   # gamma (1,1)
            pl.BlockSpec((tm, 1), lambda i: (i, 0)),             # O_i   (N,1)
            pl.BlockSpec((1, n_pad), lambda i: (0, 0)),          # D_j   (1,N)
            pl.BlockSpec((tm, n_pad), lambda i: (i, 0)),         # c_ij  (N,N)
        ],
        out_specs=pl.BlockSpec((tm, n_pad), lambda i: (i, 0)),
        compiler_params=pltpu.CompilerParams(
            dimension_semantics=("parallel",),
            vmem_limit_bytes=vmem_limit),
        cost_estimate=cost,
    )(gamma_arr, o_col, d_row, c)

    if n_pad != n:
        q = q[:n, :n]
    return q


def gravity_model_ref(O_i, D_j, c_ij, gamma):
    """Pure-JAX reference mirroring the PyTorch forward exactly."""
    n = c_ij.shape[0]
    eye = jnp.eye(n, dtype=jnp.float32)
    c = jnp.asarray(c_ij, jnp.float32) + eye * 1e-6
    g = jnp.clip(jnp.asarray(gamma, jnp.float32), 0.9, 1.0)
    f = jnp.power(c, -g) * (1.0 - eye)
    df = jnp.asarray(D_j, jnp.float32).reshape(1, n) * f
    return (jnp.asarray(O_i, jnp.float32).reshape(n, 1) * df
            / jnp.sum(df, axis=-1, keepdims=True))


if __name__ == "__main__":
    # Deliberately lane-unaligned N: exercises the padding path and a 2-step
    # row grid (n_pad = 256, TILE_M = 128).
    N = 200
    key = jax.random.PRNGKey(0)
    k1, k2, k3 = jax.random.split(key, 3)

    # Strictly positive costs and trip productions/attractions.
    c_ij = jax.random.uniform(k1, (N, N), jnp.float32, minval=0.5, maxval=5.0)
    O_i = jax.random.uniform(k2, (N, 1), jnp.float32, minval=1.0, maxval=10.0)
    D_j = jax.random.uniform(k3, (N,), jnp.float32, minval=1.0, maxval=10.0)

    # Deterministic parameter init, matching ImpedanceLayer(initial_gamma=1.0).
    gamma = jnp.float32(1.0)

    q = jax.block_until_ready(gravity_model(O_i, D_j, c_ij, gamma))
    q_ref = gravity_model_ref(O_i, D_j, c_ij, gamma)

    assert q.shape == (N, N) and q.dtype == jnp.float32
    assert jnp.allclose(q, q_ref, rtol=1e-5, atol=1e-5), "mismatch vs reference"

    # TODO(synk): for many gravity models (batched O/D/c) at small N, add a
    # leading "parallel" batch grid axis instead of one pallas_call per model.

    print("KERNEL_OK")
</pallas_src>

<mosaic_0001>
module attributes {stable_mosaic.version = 11 : i64} {
  func.func @gravity_kernel(%arg0: i32, %arg1: memref<1x1xf32, #tpu.memory_space<smem>>, %arg2: memref<128x1xf32, #tpu.memory_space<vmem>>, %arg3: memref<1x256xf32, #tpu.memory_space<vmem>>, %arg4: memref<128x256xf32, #tpu.memory_space<vmem>>, %arg5: memref<128x256xf32, #tpu.memory_space<vmem>>) attributes {dimension_semantics = [#tpu.dimension_semantics<parallel>], iteration_bounds = array<i64: 2>, scalar_prefetch = 0 : i64, scratch_operands = 0 : i64, tpu.core_type = #tpu.core_type<tc>, window_params = [{transform_indices = @transform_0, window_bounds = array<i64: 1, 1>}, {transform_indices = @transform_1, window_bounds = array<i64: 128, 1>}, {pipeline_mode = #tpu.pipeline_mode<synchronous>, transform_indices = @transform_2, window_bounds = array<i64: 1, 256>}, {transform_indices = @transform_3, window_bounds = array<i64: 128, 256>}, {transform_indices = @transform_4, window_bounds = array<i64: 128, 256>}]} {
    %c128_i32 = arith.constant 128 : i32
    %0 = arith.muli %arg0, %c128_i32 : i32
    %1 = tpu.iota {dimensions = array<i32: 0>} : vector<128x256xi32>
    %2 = vector.broadcast %0 : i32 to vector<128x256xi32>
    %3 = arith.addi %2, %1 : vector<128x256xi32>
    %4 = tpu.iota {dimensions = array<i32: 1>} : vector<128x256xi32>
    %5 = arith.cmpi ne, %3, %4 : vector<128x256xi32>
    %c0 = arith.constant 0 : index
    %c0_0 = arith.constant 0 : index
    %6 = memref.load %arg1[%c0, %c0_0] : memref<1x1xf32, #tpu.memory_space<smem>>
    %cst = arith.constant 0.899999976 : f32
    %cst_1 = arith.constant 1.000000e+00 : f32
    %7 = arith.maximumf %cst, %6 : f32
    %8 = arith.minimumf %cst_1, %7 : f32
    %c0_2 = arith.constant 0 : index
    %c0_3 = arith.constant 0 : index
    %9 = vector.load %arg4[%c0_2, %c0_3] : memref<128x256xf32, #tpu.memory_space<vmem>>, vector<128x256xf32>
    %cst_4 = arith.constant 0.000000e+00 : f32
    %10 = arith.subf %cst_4, %8 : f32
    %11 = math.log %9 : vector<128x256xf32>
    %12 = vector.broadcast %10 : f32 to vector<128x256xf32>
    %13 = arith.mulf %12, %11 : vector<128x256xf32>
    %14 = math.exp %13 : vector<128x256xf32>
    %cst_5 = arith.constant 0.000000e+00 : f32
    %15 = vector.broadcast %cst_5 : f32 to vector<128x256xf32>
    %16 = arith.select %5, %14, %15 : vector<128x256xi1>, vector<128x256xf32>
    %c0_6 = arith.constant 0 : index
    %c0_7 = arith.constant 0 : index
    %17 = vector.load %arg3[%c0_6, %c0_7] : memref<1x256xf32, #tpu.memory_space<vmem>>, vector<1x256xf32>
    %18 = vector.broadcast %17 : vector<1x256xf32> to vector<128x256xf32>
    %19 = arith.mulf %18, %16 : vector<128x256xf32>
    %cst_8 = arith.constant dense<0.000000e+00> : vector<128xf32>
    %20 = vector.multi_reduction <add>, %19, %cst_8 [1] : vector<128x256xf32> to vector<128xf32>
    %21 = vector.shape_cast %20 : vector<128xf32> to vector<128x1xf32>
    %c0_9 = arith.constant 0 : index
    %c0_10 = arith.constant 0 : index
    %22 = vector.load %arg2[%c0_9, %c0_10] : memref<128x1xf32, #tpu.memory_space<vmem>>, vector<128x1xf32>
    %23 = tpu.reciprocal %21 : vector<128x1xf32> -> vector<128x1xf32>
    %24 = arith.mulf %22, %23 : vector<128x1xf32>
    %25 = vector.broadcast %24 : vector<128x1xf32> to vector<128x256xf32>
    %26 = arith.mulf %19, %25 : vector<128x256xf32>
    %c0_11 = arith.constant 0 : index
    %c0_12 = arith.constant 0 : index
    %27 = vector.load %arg5[%c0_11, %c0_12] : memref<128x256xf32, #tpu.memory_space<vmem>>, vector<128x256xf32>
    tpu.vector_store %arg5[%c0_11, %c0_12], %26 {strides = array<i32>} : memref<128x256xf32, #tpu.memory_space<vmem>>, vector<128x256xf32>,
    return
  }
  func.func @transform_0(%arg0: i32) -> (i32, i32) {
    %c0_i32 = arith.constant 0 : i32
    %c0_i32_0 = arith.constant 0 : i32
    %c0_i32_1 = arith.constant 0 : i32
    return %c0_i32, %c0_i32_0 : i32, i32
  }
  func.func @transform_1(%arg0: i32) -> (i32, i32) {
    %c0_i32 = arith.constant 0 : i32
    %c0_i32_0 = arith.constant 0 : i32
    return %arg0, %c0_i32 : i32, i32
  }
  func.func @transform_2(%arg0: i32) -> (i32, i32) {
    %c0_i32 = arith.constant 0 : i32
    %c0_i32_0 = arith.constant 0 : i32
    %c0_i32_1 = arith.constant 0 : i32
    return %c0_i32, %c0_i32_0 : i32, i32
  }
  func.func @transform_3(%arg0: i32) -> (i32, i32) {
    %c0_i32 = arith.constant 0 : i32
    %c0_i32_0 = arith.constant 0 : i32
    return %arg0, %c0_i32 : i32, i32
  }
  func.func @transform_4(%arg0: i32) -> (i32, i32) {
    %c0_i32 = arith.constant 0 : i32
    %c0_i32_0 = arith.constant 0 : i32
    return %arg0, %c0_i32 : i32, i32
  }
}

</mosaic_0001>

<llo_original>
// kernel: tpu_custom_call.1
$region0: #{tpu_custom_call.1}
  #allocation0 [shape = 'u32[]', space=smem, size = 0x4, offset = 0x4, fixed_abs, tag = 'smem constant byte address 0x4 - core index']
  #allocation1 [shape = 'u32[144,128]{1,0:T(1,128)}', space=vmem, size = 0x12000, scoped, tag = 'internal scratch']
  #allocation2 [shape = 'f32[1,1]{1,0:T(1,128)S(6)}', space=smem, size = 0x200, scoped, tag = 'scoped memory for tpu_custom_call.1']
  %s0 = inlined_call_operand.<no memory space> [shape: f32[1,1], index: 0, kind: input, shape index: {}]
  %s1 = inlined_call_operand.vmem [shape: f32[256,1], index: 1, kind: input, shape index: {}]
  %s2 = inlined_call_operand.vmem [shape: f32[1,256], index: 2, kind: input, shape index: {}]
  %s3 = inlined_call_operand.hbm [shape: f32[256,256], index: 3, kind: input, shape index: {}]
  %s4 = inlined_call_operand.hbm [shape: f32[256,256], index: 4, kind: output, shape index: {}]
  %s5 = sld [smem:[#allocation0]]
  $region53: #{tpu_custom_call.1} parent=0
    _
  %s7 = ssub.s32 1, %s5
  %s8 = scalar_select 0, %s7, %s5
  %9 = sst [smem:[#allocation2]] %s0
  $region1: #{tpu_custom_call.1} parent=0
    #allocation3 [shape = 'u8[262144]{0}', space=vmem, size = 0x40000, scoped, tag = 'input window, operand 3']
    #allocation4 [shape = 's32[2]{0}', space=sflag, size = 0x8, scoped, tag = 'scoped memory for tpu_custom_call.1']
    #allocation5 [shape = 's32[2]{0}', space=sflag, size = 0x8, scoped, tag = 'scoped memory for tpu_custom_call.1']
    #allocation6 [shape = 'u8[262144]{0}', space=vmem, size = 0x40000, scoped, tag = 'output window, operand 0']
    %10 = vsyncpa [#allocation4], 0
    %s11 = scalar_lea.sflag [#allocation4], 1
    %12 = vsyncpa %s11, 0
    %13 = vsyncpa [#allocation5], 0
    %s14 = scalar_lea.sflag [#allocation5], 1
    %15 = vsyncpa %s14, 0
    loop: start=0, step=1, limit=4
    $region2: #{tpu_custom_call.1} parent=1 // loop_pre_header
      _
    $region3: #{tpu_custom_call.1} parent=1 // loop_header
      %s17 = sphi 0, %s21
      %p18 = scmp.ge.s32.totalorder %s17, 4
      %s25 = sphi 0, %s25
      %s27 = sphi 0, %s25
      %s28 = sphi 0, %s27
      %s42 = sphi 0, %s28
      %s48 = sphi 0, %s50
      %s51 = sphi 0, %s48
      %s52 = sphi 0, %s51
      %s68 = sphi 0, %s52
      %s72 = sphi 0, %s72
      %s74 = sphi 0, %s72
      %s75 = sphi 0, %s74
      %s89 = sphi 0, %s75
      %s95 = sphi 0, %s97
      %s98 = sphi 0, %s95
      %s99 = sphi 0, %s98
      %s115 = sphi 0, %s99
      %s121 = sphi 0, %s123
      %s124 = sphi 0, %s121
      %s125 = sphi 0, %s124
      %s141 = sphi 0, %s125
    $region4: #{tpu_custom_call.1} parent=1 // loop_header_branch
      %20 = sbr.rel (%p18) target = $region8
    $region5: #{tpu_custom_call.1} parent=1 // loop_body
      %s22 = ssub.s32 %s17, 1
      %s23 = ssub.s32 %s17, 2
      %s24 = sadd.s32 %s17, 1
      %s26 = sadd.s32 %s25, 1
      %p29 = scmp.eq.s32.totalorder %s17, 1
      %p30 = scmp.ne.s32.totalorder %s25, %s27
      %p31 = scmp.eq.s32.totalorder %s17, 0
      %p32 = por %p30, %p31
      %p33 = scmp.ne.s32.totalorder %s25, %s27
      %p34 = scmp.eq.s32.totalorder %s22, 1
      %p35 = por %p33, %p34
      %p36 = scmp.ne.s32.totalorder %s27, %s28
      %p37 = scmp.eq.s32.totalorder %s22, 0
      %p38 = por %p36, %p37
      %p39 = scmp.ne.s32.totalorder %s27, %s28
      %p40 = scmp.eq.s32.totalorder %s23, 1
      %p41 = por %p39, %p40
      %p43 = scmp.ne.s32.totalorder %s28, %s42
      %p44 = scmp.eq.s32.totalorder %s23, 0
      %p45 = por %p43, %p44
      %s46 = ssub.s32 %s17, %s24
      %p47 = scmp.eq.s32.totalorder %s46, 0
      %s49 = sadd.s32 %s48, 1
      %s50 = scalar_select %p47, %s48, %s49
      %p53 = pneg %p47
      %p54 = scmp.eq.s32.totalorder %s17, 1
      %p55 = por %p53, %p54
      %p56 = scmp.ne.s32.totalorder %s48, %s51
      %p57 = scmp.eq.s32.totalorder %s17, 0
      %p58 = por %p56, %p57
      %p59 = scmp.ne.s32.totalorder %s48, %s51
      %p60 = scmp.eq.s32.totalorder %s22, 1
      %p61 = por %p59, %p60
      %p62 = scmp.ne.s32.totalorder %s51, %s52
      %p63 = scmp.eq.s32.totalorder %s22, 0
      %p64 = por %p62, %p63
      %p65 = scmp.ne.s32.totalorder %s51, %s52
      %p66 = scmp.eq.s32.totalorder %s23, 1
      %p67 = por %p65, %p66
      %p69 = scmp.ne.s32.totalorder %s52, %s68
      %p70 = scmp.eq.s32.totalorder %s23, 0
      %p71 = por %p69, %p70
      %s73 = sadd.s32 %s72, 1
      %p76 = scmp.eq.s32.totalorder %s17, 1
      %p77 = scmp.ne.s32.totalorder %s72, %s74
      %p78 = scmp.eq.s32.totalorder %s17, 0
      %p79 = por %p77, %p78
      %p80 = scmp.ne.s32.totalorder %s72, %s74
      %p81 = scmp.eq.s32.totalorder %s22, 1
      %p82 = por %p80, %p81
      %p83 = scmp.ne.s32.totalorder %s74, %s75
      %p84 = scmp.eq.s32.totalorder %s22, 0
      %p85 = por %p83, %p84
      %p86 = scmp.ne.s32.totalorder %s74, %s75
      %p87 = scmp.eq.s32.totalorder %s23, 1
      %p88 = por %p86, %p87
      %p90 = scmp.ne.s32.totalorder %s75, %s89
      %p91 = scmp.eq.s32.totalorder %s23, 0
      %p92 = por %p90, %p91
      %s93 = ssub.s32 %s17, %s24
      %p94 = scmp.eq.s32.totalorder %s93, 0
      %s96 = sadd.s32 %s95, 1
      %s97 = scalar_select %p94, %s95, %s96
      %p100 = pneg %p94
      %p101 = scmp.eq.s32.totalorder %s17, 1
      %p102 = por %p100, %p101
      %p103 = scmp.ne.s32.totalorder %s95, %s98
      %p104 = scmp.eq.s32.totalorder %s17, 0
      %p105 = por %p103, %p104
      %p106 = scmp.ne.s32.totalorder %s95, %s98
      %p107 = scmp.eq.s32.totalorder %s22, 1
      %p108 = por %p106, %p107
      %p109 = scmp.ne.s32.totalorder %s98, %s99
      %p110 = scmp.eq.s32.totalorder %s22, 0
      %p111 = por %p109, %p110
      %p112 = scmp.ne.s32.totalorder %s98, %s99
      %p113 = scmp.eq.s32.totalorder %s23, 1
      %p114 = por %p112, %p113
      %p116 = scmp.ne.s32.totalorder %s99, %s115
      %p117 = scmp.eq.s32.totalorder %s23, 0
      %p118 = por %p116, %p117
      %s119 = ssub.s32 %s17, %s24
      %p120 = scmp.eq.s32.totalorder %s119, 0
      %s122 = sadd.s32 %s121, 1
      %s123 = scalar_select %p120, %s121, %s122
      %p126 = pneg %p120
      %p127 = scmp.eq.s32.totalorder %s17, 1
      %p128 = por %p126, %p127
      %p129 = scmp.ne.s32.totalorder %s121, %s124
      %p130 = scmp.eq.s32.totalorder %s17, 0
      %p131 = por %p129, %p130
      %p132 = scmp.ne.s32.totalorder %s121, %s124
      %p133 = scmp.eq.s32.totalorder %s22, 1
      %p134 = por %p132, %p133
      %p135 = scmp.ne.s32.totalorder %s124, %s125
      %p136 = scmp.eq.s32.totalorder %s22, 0
      %p137 = por %p135, %p136
      %p138 = scmp.ne.s32.totalorder %s124, %s125
      %p139 = scmp.eq.s32.totalorder %s23, 1
      %p140 = por %p138, %p139
      %p142 = scmp.ne.s32.totalorder %s125, %s141
      %p143 = scmp.eq.s32.totalorder %s23, 0
      %p144 = por %p142, %p143
      %p145 = scmp.le.s32.totalorder 1, %s17
      %p146 = scmp.lt.s32.totalorder %s17, 3
      %p147 = pnand %p145, %p146
      %p148 = pneg %p147
      // Predicated region
      $region9: #{tpu_custom_call.1} parent=5 // pred_check
        _
      $region10: #{tpu_custom_call.1} parent=5 // pred_check_branch
        %150 = sbr.rel (%p147) target = $region12
      $region11: #{tpu_custom_call.1} parent=5 // pred_region
        %s151 = ssub.s32 %s17, 1
        // Predicated region
        $region13: #{tpu_custom_call.1} parent=11 // pred_check
          %p152 = pneg %p38
        $region14: #{tpu_custom_call.1} parent=11 // pred_check_branch
          %154 = sbr.rel (%p152) target = $region16
        $region15: #{tpu_custom_call.1} parent=11 // pred_region
          _
        $region16: #{tpu_custom_call.1} parent=11 // pred_fallthru
          _
        // Predicated region
        $region17: #{tpu_custom_call.1} parent=11 // pred_check
          %p155 = pneg %p85
        $region18: #{tpu_custom_call.1} parent=11 // pred_check_branch
          %157 = sbr.rel (%p155) target = $region20
        $region19: #{tpu_custom_call.1} parent=11 // pred_region
          _
        $region20: #{tpu_custom_call.1} parent=11 // pred_fallthru
          _
      $region12: #{tpu_custom_call.1} parent=5 // pred_fallthru
        _
      %p158 = scmp.lt.s32.totalorder %s17, 2
      // Predicated region
      $region21: #{tpu_custom_call.1} parent=5 // pred_check
        %p159 = pneg %p158
      $region22: #{tpu_custom_call.1} parent=5 // pred_check_branch
        %161 = sbr.rel (%p159) target = $region24
      $region23: #{tpu_custom_call.1} parent=5 // pred_region
        // Predicated region
        $region25: #{tpu_custom_call.1} parent=23 // pred_check
          %p162 = pneg %p58
        $region26: #{tpu_custom_call.1} parent=23 // pred_check_branch
          %164 = sbr.rel (%p162) target = $region28
        $region27: #{tpu_custom_call.1} parent=23 // pred_region
          %s165 = smul.u32 16, %s17
          %p166 = scmp.lt.s32.totalorder %s165, 31
          %s167 = scalar_select %p166, %s165, 31
          %s168 = smul.addr %s167, 8
          %s169 = scalar_lea.vmem %s1, %s168
          %s170 = smul.u32 16, %s17
        $region28: #{tpu_custom_call.1} parent=23 // pred_fallthru
          _
        // Predicated region
        $region29: #{tpu_custom_call.1} parent=23 // pred_check
          %p171 = pneg %p105
        $region30: #{tpu_custom_call.1} parent=23 // pred_check_branch
          %173 = sbr.rel (%p171) target = $region32
        $region31: #{tpu_custom_call.1} parent=23 // pred_region
          %s174 = sand.u32 %s95, 1
          %s175 = scalar_lea.sflag [#allocation4], %s174
          %s176 = sand.u32 %s95, 1
          %s177 = smul.addr %s176, 256
          %s178 = scalar_lea.vmem [#allocation3], %s177
          %s179 = smul.u32 16, %s17
          %s181 = ssub.s32 4096, 4096
          %182 = vsyncadd %s175, %s181
          %s183 = smul.addr %s179, 2
          %s184 = smul.addr %s183, 128
          %s185 = scalar_lea.hbm %s3, %s184
          %s186 = sshll.u32 %s178, 4
          %s187 = int_to_ptr.vmem [resolvable:$true] %s186
          %192 = dma.hbm_to_vmem [thread:$0]  %s185, 4096, %s187, %s175, 256, 256, 16
        $region32: #{tpu_custom_call.1} parent=23 // pred_fallthru
          _
      $region24: #{tpu_custom_call.1} parent=5 // pred_fallthru
        _
      %p193 = scmp.le.s32.totalorder 1, %s17
      %p194 = scmp.lt.s32.totalorder %s17, 3
      %p195 = pnand %p193, %p194
      %p196 = pneg %p195
      // Predicated region
      $region33: #{tpu_custom_call.1} parent=5 // pred_check
        _
      $region34: #{tpu_custom_call.1} parent=5 // pred_check_branch
        %198 = sbr.rel (%p195) target = $region36
      $region35: #{tpu_custom_call.1} parent=5 // pred_region
        %s199 = ssub.s32 %s17, 1
        %s200 = sand.u32 %s98, 1
        %s201 = scalar_lea.sflag [#allocation4], %s200
        %s202 = sand.u32 %s98, 1
        %s203 = smul.addr %s202, 256
        %s204 = scalar_lea.vmem [#allocation3], %s203
        // Predicated region
        $region37: #{tpu_custom_call.1} parent=35 // pred_check
          %p205 = pneg %p111
        $region38: #{tpu_custom_call.1} parent=35 // pred_check_branch
          %207 = sbr.rel (%p205) target = $region40
        $region39: #{tpu_custom_call.1} parent=35 // pred_region
          %208 = dma.done %s201, 4096
        $region40: #{tpu_custom_call.1} parent=35 // pred_fallthru
          _
        %p209 = pneg %p38
        %p210 = pneg %p35
        %s211 = smul.u32 16, %s22
        %p212 = scmp.lt.s32.totalorder %s211, 31
        %s213 = scalar_select %p212, %s211, 31
        %s214 = smul.addr %s213, 8
        %s215 = scalar_lea.vmem %s1, %s214
        %p216 = pneg %p64
        %p217 = pneg %p61
        %p218 = pneg %p85
        %p219 = pneg %p82
        %s220 = sand.u32 %s98, 1
        %s221 = scalar_lea.sflag [#allocation4], %s220
        %s222 = sand.u32 %s98, 1
        %s223 = smul.addr %s222, 256
        %s224 = scalar_lea.vmem [#allocation3], %s223
        %p225 = pneg %p111
        %p226 = pneg %p108
        %p227 = pneg %p137
        %p228 = pneg %p134
        %s229 = sand.u32 %s124, 1
        %s230 = scalar_lea.sflag [#allocation5], %s229
        %s231 = sand.u32 %s124, 1
        %s232 = smul.addr %s231, 256
        %s233 = scalar_lea.vmem [#allocation6], %s232
        %s234 = smul.u32 16, %s22
        %p235 = scmp.lt.s32.totalorder %s234, 31
        %s236 = scalar_select %p235, %s234, 31
        %s237 = smul.addr %s236, 8
        %s238 = scalar_lea.vmem %s1, %s237
        %s239 = smul.u32 16, %s22
        %s240 = smul.u32 16, %s22
        %s241 = smul.u32 16, %s22
        %s242 = smul.u32 %s22, 128
        %v243 = vlaneseq
        %v244 = vshrl.u32 %v243, 7
        %v245 = vadd.s32 %v244, 8
        %v246 = vadd.s32 %v244, 16
        %v247 = vadd.s32 %v244, 24
        %v248 = vadd.s32 %v244, 32
        %v249 = vadd.s32 %v244, 40
        %v250 = vadd.s32 %v244, 48
        %v251 = vadd.s32 %v244, 56
        %v252 = vadd.s32 %v244, 64
        %v253 = vadd.s32 %v244, 72
        %v254 = vadd.s32 %v244, 80
        %v255 = vadd.s32 %v244, 88
        %v256 = vadd.s32 %v244, 96
        %v257 = vadd.s32 %v244, 104
        %v258 = vadd.s32 %v244, 112
        %v259 = vadd.s32 %v244, 120
        %v260 = vstv %s242
        %v261 = vadd.s32 %v260, %v244
        %v262 = vadd.s32 %v260, %v245
        %v263 = vadd.s32 %v260, %v246
        %v264 = vadd.s32 %v260, %v247
        %v265 = vadd.s32 %v260, %v248
        %v266 = vadd.s32 %v260, %v249
        %v267 = vadd.s32 %v260, %v250
        %v268 = vadd.s32 %v260, %v251
        %v269 = vadd.s32 %v260, %v252
        %v270 = vadd.s32 %v260, %v253
        %v271 = vadd.s32 %v260, %v254
        %v272 = vadd.s32 %v260, %v255
        %v273 = vadd.s32 %v260, %v256
        %v274 = vadd.s32 %v260, %v257
        %v275 = vadd.s32 %v260, %v258
        %v276 = vadd.s32 %v260, %v259
        %v277 = vlaneseq
        %v278 = vand.u32 %v277, 127
        %v279 = vadd.s32 %v278, 128
        %vm280 = vcmp.ne.s32.totalorder %v261, %v278
        %vm281 = vcmp.ne.s32.totalorder %v261, %v279
        %vm282 = vcmp.ne.s32.totalorder %v262, %v278
        %vm283 = vcmp.ne.s32.totalorder %v262, %v279
        %vm284 = vcmp.ne.s32.totalorder %v263, %v278
        %vm285 = vcmp.ne.s32.totalorder %v263, %v279
        %vm286 = vcmp.ne.s32.totalorder %v264, %v278
        %vm287 = vcmp.ne.s32.totalorder %v264, %v279
        %vm288 = vcmp.ne.s32.totalorder %v265, %v278
        %vm289 = vcmp.ne.s32.totalorder %v265, %v279
        %vm290 = vcmp.ne.s32.totalorder %v266, %v278
        %vm291 = vcmp.ne.s32.totalorder %v266, %v279
        %vm292 = vcmp.ne.s32.totalorder %v267, %v278
        %vm293 = vcmp.ne.s32.totalorder %v267, %v279
        %vm294 = vcmp.ne.s32.totalorder %v268, %v278
        %vm295 = vcmp.ne.s32.totalorder %v268, %v279
        %vm296 = vcmp.ne.s32.totalorder %v269, %v278
        %vm297 = vcmp.ne.s32.totalorder %v269, %v279
        %vm298 = vcmp.ne.s32.totalorder %v270, %v278
        %vm299 = vcmp.ne.s32.totalorder %v270, %v279
        %vm300 = vcmp.ne.s32.totalorder %v271, %v278
        %vm301 = vcmp.ne.s32.totalorder %v271, %v279
        %vm302 = vcmp.ne.s32.totalorder %v272, %v278
        %vm303 = vcmp.ne.s32.totalorder %v272, %v279
        %vm304 = vcmp.ne.s32.totalorder %v273, %v278
        %vm305 = vcmp.ne.s32.totalorder %v273, %v279
        %vm306 = vcmp.ne.s32.totalorder %v274, %v278
        %vm307 = vcmp.ne.s32.totalorder %v274, %v279
        %vm308 = vcmp.ne.s32.totalorder %v275, %v278
        %vm309 = vcmp.ne.s32.totalorder %v275, %v279
        %vm310 = vcmp.ne.s32.totalorder %v276, %v278
        %vm311 = vcmp.ne.s32.totalorder %v276, %v279
        %s312 = sld [smem:[#allocation2]]
        %s313 = smax.f32 %s312, 0.9
        %s314 = smin.f32 %s313, 1.0
        %v315 = vld [vmem:[%s204] sm:$0xff]
        %v316 = vld [vmem:[%s204 + $0x8] sm:$0xff]
        %v317 = vld [vmem:[%s204 + $0x10] sm:$0xff]
        %v318 = vld [vmem:[%s204 + $0x18] sm:$0xff]
        %v319 = vld [vmem:[%s204 + $0x20] sm:$0xff]
        %v320 = vld [vmem:[%s204 + $0x28] sm:$0xff]
        %v321 = vld [vmem:[%s204 + $0x30] sm:$0xff]
        %v322 = vld [vmem:[%s204 + $0x38] sm:$0xff]
        %v323 = vld [vmem:[%s204 + $0x40] sm:$0xff]
        %v324 = vld [vmem:[%s204 + $0x48] sm:$0xff]
        %v325 = vld [vmem:[%s204 + $0x50] sm:$0xff]
        %v326 = vld [vmem:[%s204 + $0x58] sm:$0xff]
        %v327 = vld [vmem:[%s204 + $0x60] sm:$0xff]
        %v328 = vld [vmem:[%s204 + $0x68] sm:$0xff]
        %v329 = vld [vmem:[%s204 + $0x70] sm:$0xff]
        %v330 = vld [vmem:[%s204 + $0x78] sm:$0xff]
        %v331 = vld [vmem:[%s204 + $0x80] sm:$0xff]
        %v332 = vld [vmem:[%s204 + $0x88] sm:$0xff]
        %v333 = vld [vmem:[%s204 + $0x90] sm:$0xff]
        %v334 = vld [vmem:[%s204 + $0x98] sm:$0xff]
        %v335 = vld [vmem:[%s204 + $0xa0] sm:$0xff]
        %v336 = vld [vmem:[%s204 + $0xa8] sm:$0xff]
        %v337 = vld [vmem:[%s204 + $0xb0] sm:$0xff]
        %v338 = vld [vmem:[%s204 + $0xb8] sm:$0xff]
        %v339 = vld [vmem:[%s204 + $0xc0] sm:$0xff]
        %v340 = vld [vmem:[%s204 + $0xc8] sm:$0xff]
        %v341 = vld [vmem:[%s204 + $0xd0] sm:$0xff]
        %v342 = vld [vmem:[%s204 + $0xd8] sm:$0xff]
        %v343 = vld [vmem:[%s204 + $0xe0] sm:$0xff]
        %v344 = vld [vmem:[%s204 + $0xe8] sm:$0xff]
        %v345 = vld [vmem:[%s204 + $0xf0] sm:$0xff]
        %v346 = vld [vmem:[%s204 + $0xf8] sm:$0xff]
        %s347 = ssub.f32 0.0, %s314
        %v348 = vlog2.pop %v315
        %v349 = vmul.f32 %v348, 0.6931472
        %v350 = vlog2.pop %v316
        %v351 = vmul.f32 %v350, 0.6931472
        %v352 = vlog2.pop %v317
        %v353 = vmul.f32 %v352, 0.6931472
        %v354 = vlog2.pop %v318
        %v355 = vmul.f32 %v354, 0.6931472
        %v356 = vlog2.pop %v319
        %v357 = vmul.f32 %v356, 0.6931472
        %v358 = vlog2.pop %v320
        %v359 = vmul.f32 %v358, 0.6931472
        %v360 = vlog2.pop %v321
        %v361 = vmul.f32 %v360, 0.6931472
        %v362 = vlog2.pop %v322
        %v363 = vmul.f32 %v362, 0.6931472
        %v364 = vlog2.pop %v323
        %v365 = vmul.f32 %v364, 0.6931472
        %v366 = vlog2.pop %v324
        %v367 = vmul.f32 %v366, 0.6931472
        %v368 = vlog2.pop %v325
        %v369 = vmul.f32 %v368, 0.6931472
        %v370 = vlog2.pop %v326
        %v371 = vmul.f32 %v370, 0.6931472
        %v372 = vlog2.pop %v327
        %v373 = vmul.f32 %v372, 0.6931472
        %v374 = vlog2.pop %v328
        %v375 = vmul.f32 %v374, 0.6931472
        %v376 = vlog2.pop %v329
        %v377 = vmul.f32 %v376, 0.6931472
        %v378 = vlog2.pop %v330
        %v379 = vmul.f32 %v378, 0.6931472
        %v380 = vlog2.pop %v331
        %v381 = vmul.f32 %v380, 0.6931472
        %v382 = vlog2.pop %v332
        %v383 = vmul.f32 %v382, 0.6931472
        %v384 = vlog2.pop %v333
        %v385 = vmul.f32 %v384, 0.6931472
        %v386 = vlog2.pop %v334
        %v387 = vmul.f32 %v386, 0.6931472
        %v388 = vlog2.pop %v335
        %v389 = vmul.f32 %v388, 0.6931472
        %v390 = vlog2.pop %v336
        %v391 = vmul.f32 %v390, 0.6931472
        %v392 = vlog2.pop %v337
        %v393 = vmul.f32 %v392, 0.6931472
        %v394 = vlog2.pop %v338
        %v395 = vmul.f32 %v394, 0.6931472
        %v396 = vlog2.pop %v339
        %v397 = vmul.f32 %v396, 0.6931472
        %v398 = vlog2.pop %v340
        %v399 = vmul.f32 %v398, 0.6931472
        %v400 = vlog2.pop %v341
        %v401 = vmul.f32 %v400, 0.6931472
        %v402 = vlog2.pop %v342
        %v403 = vmul.f32 %v402, 0.6931472
        %v404 = vlog2.pop %v343
        %v405 = vmul.f32 %v404, 0.6931472
        %v406 = vlog2.pop %v344
        %v407 = vmul.f32 %v406, 0.6931472
        %v408 = vlog2.pop %v345
        %v409 = vmul.f32 %v408, 0.6931472
        %v410 = vlog2.pop %v346
        %v411 = vmul.f32 %v410, 0.6931472
        %v412 = vstv %s347
        %v413 = vmul.f32 %v412, %v349
        %v414 = vmul.f32 %v412, %v351
        %v415 = vmul.f32 %v412, %v353
        %v416 = vmul.f32 %v412, %v355
        %v417 = vmul.f32 %v412, %v357
        %v418 = vmul.f32 %v412, %v359
        %v419 = vmul.f32 %v412, %v361
        %v420 = vmul.f32 %v412, %v363
        %v421 = vmul.f32 %v412, %v365
        %v422 = vmul.f32 %v412, %v367
        %v423 = vmul.f32 %v412, %v369
        %v424 = vmul.f32 %v412, %v371
        %v425 = vmul.f32 %v412, %v373
        %v426 = vmul.f32 %v412, %v375
        %v427 = vmul.f32 %v412, %v377
        %v428 = vmul.f32 %v412, %v379
        %v429 = vmul.f32 %v412, %v381
        %v430 = vmul.f32 %v412, %v383
        %v431 = vmul.f32 %v412, %v385
        %v432 = vmul.f32 %v412, %v387
        %v433 = vmul.f32 %v412, %v389
        %v434 = vmul.f32 %v412, %v391
        %v435 = vmul.f32 %v412, %v393
        %v436 = vmul.f32 %v412, %v395
        %v437 = vmul.f32 %v412, %v397
        %v438 = vmul.f32 %v412, %v399
        %v439 = vmul.f32 %v412, %v401
        %v440 = vmul.f32 %v412, %v403
        %v441 = vmul.f32 %v412, %v405
        %v442 = vmul.f32 %v412, %v407
        %v443 = vmul.f32 %v412, %v409
        %v444 = vmul.f32 %v412, %v411
        %v445 = vmul.f32 %v413, 1.442695
        %v446 = vpow.pop %v445
        %v447 = vmul.f32 %v414, 1.442695
        %v448 = vpow.pop %v447
        %v449 = vmul.f32 %v415, 1.442695
        %v450 = vpow.pop %v449
        %v451 = vmul.f32 %v416, 1.442695
        %v452 = vpow.pop %v451
        %v453 = vmul.f32 %v417, 1.442695
        %v454 = vpow.pop %v453
        %v455 = vmul.f32 %v418, 1.442695
        %v456 = vpow.pop %v455
        %v457 = vmul.f32 %v419, 1.442695
        %v458 = vpow.pop %v457
        %v459 = vmul.f32 %v420, 1.442695
        %v460 = vpow.pop %v459
        %v461 = vmul.f32 %v421, 1.442695
        %v462 = vpow.pop %v461
        %v463 = vmul.f32 %v422, 1.442695
        %v464 = vpow.pop %v463
        %v465 = vmul.f32 %v423, 1.442695
        %v466 = vpow.pop %v465
        %v467 = vmul.f32 %v424, 1.442695
        %v468 = vpow.pop %v467
        %v469 = vmul.f32 %v425, 1.442695
        %v470 = vpow.pop %v469
        %v471 = vmul.f32 %v426, 1.442695
        %v472 = vpow.pop %v471
        %v473 = vmul.f32 %v427, 1.442695
        %v474 = vpow.pop %v473
        %v475 = vmul.f32 %v428, 1.442695
        %v476 = vpow.pop %v475
        %v477 = vmul.f32 %v429, 1.442695
        %v478 = vpow.pop %v477
        %v479 = vmul.f32 %v430, 1.442695
        %v480 = vpow.pop %v479
        %v481 = vmul.f32 %v431, 1.442695
        %v482 = vpow.pop %v481
        %v483 = vmul.f32 %v432, 1.442695
        %v484 = vpow.pop %v483
        %v485 = vmul.f32 %v433, 1.442695
        %v486 = vpow.pop %v485
        %v487 = vmul.f32 %v434, 1.442695
        %v488 = vpow.pop %v487
        %v489 = vmul.f32 %v435, 1.442695
        %v490 = vpow.pop %v489
        %v491 = vmul.f32 %v436, 1.442695
        %v492 = vpow.pop %v491
        %v493 = vmul.f32 %v437, 1.442695
        %v494 = vpow.pop %v493
        %v495 = vmul.f32 %v438, 1.442695
        %v496 = vpow.pop %v495
        %v497 = vmul.f32 %v439, 1.442695
        %v498 = vpow.pop %v497
        %v499 = vmul.f32 %v440, 1.442695
        %v500 = vpow.pop %v499
        %v501 = vmul.f32 %v441, 1.442695
        %v502 = vpow.pop %v501
        %v503 = vmul.f32 %v442, 1.442695
        %v504 = vpow.pop %v503
        %v505 = vmul.f32 %v443, 1.442695
        %v506 = vpow.pop %v505
        %v507 = vmul.f32 %v444, 1.442695
        %v508 = vpow.pop %v507
        %v509 = vsel %vm280, %v446, 0.0
        %v510 = vsel %vm281, %v448, 0.0
        %v511 = vsel %vm282, %v450, 0.0
        %v512 = vsel %vm283, %v452, 0.0
        %v513 = vsel %vm284, %v454, 0.0
        %v514 = vsel %vm285, %v456, 0.0
        %v515 = vsel %vm286, %v458, 0.0
        %v516 = vsel %vm287, %v460, 0.0
        %v517 = vsel %vm288, %v462, 0.0
        %v518 = vsel %vm289, %v464, 0.0
        %v519 = vsel %vm290, %v466, 0.0
        %v520 = vsel %vm291, %v468, 0.0
        %v521 = vsel %vm292, %v470, 0.0
        %v522 = vsel %vm293, %v472, 0.0
        %v523 = vsel %vm294, %v474, 0.0
        %v524 = vsel %vm295, %v476, 0.0
        %v525 = vsel %vm296, %v478, 0.0
        %v526 = vsel %vm297, %v480, 0.0
        %v527 = vsel %vm298, %v482, 0.0
        %v528 = vsel %vm299, %v484, 0.0
        %v529 = vsel %vm300, %v486, 0.0
        %v530 = vsel %vm301, %v488, 0.0
        %v531 = vsel %vm302, %v490, 0.0
        %v532 = vsel %vm303, %v492, 0.0
        %v533 = vsel %vm304, %v494, 0.0
        %v534 = vsel %vm305, %v496, 0.0
        %v535 = vsel %vm306, %v498, 0.0
        %v536 = vsel %vm307, %v500, 0.0
        %v537 = vsel %vm308, %v502, 0.0
        %v538 = vsel %vm309, %v504, 0.0
        %v539 = vsel %vm310, %v506, 0.0
        %v540 = vsel %vm311, %v508, 0.0
        %v541 = vld [vmem:[%s2] sm:$0x3]
        %v543 = vlaneseq
        %v544 = vshrl.u32 %v543, 7
        %v545 = vsub.s32 0, %v544
        %v546 = vrot.slane %v541, %v545
        %v547 = vlaneseq
        %v548 = vshrl.u32 %v547, 7
        %v549 = vsub.s32 1, %v548
        %v550 = vrot.slane %v541, %v549
        %v553 = vmul.f32 %v546, %v509
        %v554 = vmul.f32 %v550, %v510
        %v555 = vmul.f32 %v546, %v511
        %v556 = vmul.f32 %v550, %v512
        %v557 = vmul.f32 %v546, %v513
        %v558 = vmul.f32 %v550, %v514
        %v559 = vmul.f32 %v546, %v515
        %v560 = vmul.f32 %v550, %v516
        %v561 = vmul.f32 %v546, %v517
        %v562 = vmul.f32 %v550, %v518
        %v563 = vmul.f32 %v546, %v519
        %v564 = vmul.f32 %v550, %v520
        %v565 = vmul.f32 %v546, %v521
        %v566 = vmul.f32 %v550, %v522
        %v567 = vmul.f32 %v546, %v523
        %v568 = vmul.f32 %v550, %v524
        %v569 = vmul.f32 %v546, %v525
        %v570 = vmul.f32 %v550, %v526
        %v571 = vmul.f32 %v546, %v527
        %v572 = vmul.f32 %v550, %v528
        %v573 = vmul.f32 %v546, %v529
        %v574 = vmul.f32 %v550, %v530
        %v575 = vmul.f32 %v546, %v531
        %v576 = vmul.f32 %v550, %v532
        %v577 = vmul.f32 %v546, %v533
        %v578 = vmul.f32 %v550, %v534
        %v579 = vmul.f32 %v546, %v535
        %v580 = vmul.f32 %v550, %v536
        %v581 = vmul.f32 %v546, %v537
        %v582 = vmul.f32 %v550, %v538
        %v583 = vmul.f32 %v546, %v539
        %v584 = vmul.f32 %v550, %v540
        %v585 = vadd.f32 %v553, %v554
        %586 = vadd.xlane.f32.xlu0 %v585
        %v587 = vpop.xlane.xlu0 %586
        %v588 = vadd.f32 %v555, %v556
        %589 = vadd.xlane.f32.xlu0 %v588
        %v590 = vpop.xlane.xlu0 %589
        %v591 = vadd.f32 %v557, %v558
        %592 = vadd.xlane.f32.xlu0 %v591
        %v593 = vpop.xlane.xlu0 %592
        %v594 = vadd.f32 %v559, %v560
        %595 = vadd.xlane.f32.xlu0 %v594
        %v596 = vpop.xlane.xlu0 %595
        %v597 = vadd.f32 %v561, %v562
        %598 = vadd.xlane.f32.xlu0 %v597
        %v599 = vpop.xlane.xlu0 %598
        %v600 = vadd.f32 %v563, %v564
        %601 = vadd.xlane.f32.xlu0 %v600
        %v602 = vpop.xlane.xlu0 %601
        %v603 = vadd.f32 %v565, %v566
        %604 = vadd.xlane.f32.xlu0 %v603
        %v605 = vpop.xlane.xlu0 %604
        %v606 = vadd.f32 %v567, %v568
        %607 = vadd.xlane.f32.xlu0 %v606
        %v608 = vpop.xlane.xlu0 %607
        %v609 = vadd.f32 %v569, %v570
        %610 = vadd.xlane.f32.xlu0 %v609
        %v611 = vpop.xlane.xlu0 %610
        %v612 = vadd.f32 %v571, %v572
        %613 = vadd.xlane.f32.xlu0 %v612
        %v614 = vpop.xlane.xlu0 %613
        %v615 = vadd.f32 %v573, %v574
        %616 = vadd.xlane.f32.xlu0 %v615
        %v617 = vpop.xlane.xlu0 %616
        %v618 = vadd.f32 %v575, %v576
        %619 = vadd.xlane.f32.xlu0 %v618
        %v620 = vpop.xlane.xlu0 %619
        %v621 = vadd.f32 %v577, %v578
        %622 = vadd.xlane.f32.xlu0 %v621
        %v623 = vpop.xlane.xlu0 %622
        %v624 = vadd.f32 %v579, %v580
        %625 = vadd.xlane.f32.xlu0 %v624
        %v626 = vpop.xlane.xlu0 %625
        %v627 = vadd.f32 %v581, %v582
        %628 = vadd.xlane.f32.xlu0 %v627
        %v629 = vpop.xlane.xlu0 %628
        %v630 = vadd.f32 %v583, %v584
        %631 = vadd.xlane.f32.xlu0 %v630
        %v632 = vpop.xlane.xlu0 %631
        %v633 = vld [vmem:[%s238] sm:$0xff]
        %v634 = vld [vmem:[%s238 + $0x8] sm:$0xff]
        %v635 = vld [vmem:[%s238 + $0x10] sm:$0xff]
        %v636 = vld [vmem:[%s238 + $0x18] sm:$0xff]
        %v637 = vld [vmem:[%s238 + $0x20] sm:$0xff]
        %v638 = vld [vmem:[%s238 + $0x28] sm:$0xff]
        %v639 = vld [vmem:[%s238 + $0x30] sm:$0xff]
        %v640 = vld [vmem:[%s238 + $0x38] sm:$0xff]
        %v641 = vld [vmem:[%s238 + $0x40] sm:$0xff]
        %v642 = vld [vmem:[%s238 + $0x48] sm:$0xff]
        %v643 = vld [vmem:[%s238 + $0x50] sm:$0xff]
        %v644 = vld [vmem:[%s238 + $0x58] sm:$0xff]
        %v645 = vld [vmem:[%s238 + $0x60] sm:$0xff]
        %v646 = vld [vmem:[%s238 + $0x68] sm:$0xff]
        %v647 = vld [vmem:[%s238 + $0x70] sm:$0xff]
        %v648 = vld [vmem:[%s238 + $0x78] sm:$0xff]
        %v649 = vrcp.pop %v587
        %v650 = vrcp.pop %v590
        %v651 = vrcp.pop %v593
        %v652 = vrcp.pop %v596
        %v653 = vrcp.pop %v599
        %v654 = vrcp.pop %v602
        %v655 = vrcp.pop %v605
        %v656 = vrcp.pop %v608
        %v657 = vrcp.pop %v611
        %v658 = vrcp.pop %v614
        %v659 = vrcp.pop %v617
        %v660 = vrcp.pop %v620
        %v661 = vrcp.pop %v623
        %v662 = vrcp.pop %v626
        %v663 = vrcp.pop %v629
        %v664 = vrcp.pop %v632
        %v665 = vmul.f32 %v633, %v649
        %v666 = vmul.f32 %v634, %v650
        %v667 = vmul.f32 %v635, %v651
        %v668 = vmul.f32 %v636, %v652
        %v669 = vmul.f32 %v637, %v653
        %v670 = vmul.f32 %v638, %v654
        %v671 = vmul.f32 %v639, %v655
        %v672 = vmul.f32 %v640, %v656
        %v673 = vmul.f32 %v641, %v657
        %v674 = vmul.f32 %v642, %v658
        %v675 = vmul.f32 %v643, %v659
        %v676 = vmul.f32 %v644, %v660
        %v677 = vmul.f32 %v645, %v661
        %v678 = vmul.f32 %v646, %v662
        %v679 = vmul.f32 %v647, %v663
        %v680 = vmul.f32 %v648, %v664
        %682 = vset.pattern.permute.xlu0 0
        %683 = vperm.xlu0 %682, %v665
        %v684 = vpop.permute.xlu0 %683
        %687 = vset.pattern.permute.xlu0 0
        %688 = vperm.xlu0 %687, %v666
        %v689 = vpop.permute.xlu0 %688
        %692 = vset.pattern.permute.xlu0 0
        %693 = vperm.xlu0 %692, %v667
        %v694 = vpop.permute.xlu0 %693
        %697 = vset.pattern.permute.xlu0 0
        %698 = vperm.xlu0 %697, %v668
        %v699 = vpop.permute.xlu0 %698
        %702 = vset.pattern.permute.xlu0 0
        %703 = vperm.xlu0 %702, %v669
        %v704 = vpop.permute.xlu0 %703
        %707 = vset.pattern.permute.xlu0 0
        %708 = vperm.xlu0 %707, %v670
        %v709 = vpop.permute.xlu0 %708
        %712 = vset.pattern.permute.xlu0 0
        %713 = vperm.xlu0 %712, %v671
        %v714 = vpop.permute.xlu0 %713
        %717 = vset.pattern.permute.xlu0 0
        %718 = vperm.xlu0 %717, %v672
        %v719 = vpop.permute.xlu0 %718
        %722 = vset.pattern.permute.xlu0 0
        %723 = vperm.xlu0 %722, %v673
        %v724 = vpop.permute.xlu0 %723
        %727 = vset.pattern.permute.xlu0 0
        %728 = vperm.xlu0 %727, %v674
        %v729 = vpop.permute.xlu0 %728
        %732 = vset.pattern.permute.xlu0 0
        %733 = vperm.xlu0 %732, %v675
        %v734 = vpop.permute.xlu0 %733
        %737 = vset.pattern.permute.xlu0 0
        %738 = vperm.xlu0 %737, %v676
        %v739 = vpop.permute.xlu0 %738
        %742 = vset.pattern.permute.xlu0 0
        %743 = vperm.xlu0 %742, %v677
        %v744 = vpop.permute.xlu0 %743
        %747 = vset.pattern.permute.xlu0 0
        %748 = vperm.xlu0 %747, %v678
        %v749 = vpop.permute.xlu0 %748
        %752 = vset.pattern.permute.xlu0 0
        %753 = vperm.xlu0 %752, %v679
        %v754 = vpop.permute.xlu0 %753
        %757 = vset.pattern.permute.xlu0 0
        %758 = vperm.xlu0 %757, %v680
        %v759 = vpop.permute.xlu0 %758
        %v761 = vmul.f32 %v553, %v684
        %v762 = vmul.f32 %v554, %v684
        %v763 = vmul.f32 %v555, %v689
        %v764 = vmul.f32 %v556, %v689
        %v765 = vmul.f32 %v557, %v694
        %v766 = vmul.f32 %v558, %v694
        %v767 = vmul.f32 %v559, %v699
        %v768 = vmul.f32 %v560, %v699
        %v769 = vmul.f32 %v561, %v704
        %v770 = vmul.f32 %v562, %v704
        %v771 = vmul.f32 %v563, %v709
        %v772 = vmul.f32 %v564, %v709
        %v773 = vmul.f32 %v565, %v714
        %v774 = vmul.f32 %v566, %v714
        %v775 = vmul.f32 %v567, %v719
        %v776 = vmul.f32 %v568, %v719
        %v777 = vmul.f32 %v569, %v724
        %v778 = vmul.f32 %v570, %v724
        %v779 = vmul.f32 %v571, %v729
        %v780 = vmul.f32 %v572, %v729
        %v781 = vmul.f32 %v573, %v734
        %v782 = vmul.f32 %v574, %v734
        %v783 = vmul.f32 %v575, %v739
        %v784 = vmul.f32 %v576, %v739
        %v785 = vmul.f32 %v577, %v744
        %v786 = vmul.f32 %v578, %v744
        %v787 = vmul.f32 %v579, %v749
        %v788 = vmul.f32 %v580, %v749
        %v789 = vmul.f32 %v581, %v754
        %v790 = vmul.f32 %v582, %v754
        %v791 = vmul.f32 %v583, %v759
        %v792 = vmul.f32 %v584, %v759
        %793 = vst [vmem:[%s233] sm:$0xff] %v761
        %794 = vst [vmem:[%s233 + $0x8] sm:$0xff] %v762
        %795 = vst [vmem:[%s233 + $0x10] sm:$0xff] %v763
        %796 = vst [vmem:[%s233 + $0x18] sm:$0xff] %v764
        %797 = vst [vmem:[%s233 + $0x20] sm:$0xff] %v765
        %798 = vst [vmem:[%s233 + $0x28] sm:$0xff] %v766
        %799 = vst [vmem:[%s233 + $0x30] sm:$0xff] %v767
        %800 = vst [vmem:[%s233 + $0x38] sm:$0xff] %v768
        %801 = vst [vmem:[%s233 + $0x40] sm:$0xff] %v769
        %802 = vst [vmem:[%s233 + $0x48] sm:$0xff] %v770
        %803 = vst [vmem:[%s233 + $0x50] sm:$0xff] %v771
        %804 = vst [vmem:[%s233 + $0x58] sm:$0xff] %v772
        %805 = vst [vmem:[%s233 + $0x60] sm:$0xff] %v773
        %806 = vst [vmem:[%s233 + $0x68] sm:$0xff] %v774
        %807 = vst [vmem:[%s233 + $0x70] sm:$0xff] %v775
        %808 = vst [vmem:[%s233 + $0x78] sm:$0xff] %v776
        %809 = vst [vmem:[%s233 + $0x80] sm:$0xff] %v777
        %810 = vst [vmem:[%s233 + $0x88] sm:$0xff] %v778
        %811 = vst [vmem:[%s233 + $0x90] sm:$0xff] %v779
        %812 = vst [vmem:[%s233 + $0x98] sm:$0xff] %v780
        %813 = vst [vmem:[%s233 + $0xa0] sm:$0xff] %v781
        %814 = vst [vmem:[%s233 + $0xa8] sm:$0xff] %v782
        %815 = vst [vmem:[%s233 + $0xb0] sm:$0xff] %v783
        %816 = vst [vmem:[%s233 + $0xb8] sm:$0xff] %v784
        %817 = vst [vmem:[%s233 + $0xc0] sm:$0xff] %v785
        %818 = vst [vmem:[%s233 + $0xc8] sm:$0xff] %v786
        %819 = vst [vmem:[%s233 + $0xd0] sm:$0xff] %v787
        %820 = vst [vmem:[%s233 + $0xd8] sm:$0xff] %v788
        %821 = vst [vmem:[%s233 + $0xe0] sm:$0xff] %v789
        %822 = vst [vmem:[%s233 + $0xe8] sm:$0xff] %v790
        %823 = vst [vmem:[%s233 + $0xf0] sm:$0xff] %v791
        %824 = vst [vmem:[%s233 + $0xf8] sm:$0xff] %v792
        %s825 = sand.u32 %s124, 1
        %s826 = scalar_lea.sflag [#allocation5], %s825
        %s827 = sand.u32 %s124, 1
        %s828 = smul.addr %s827, 256
        %s829 = scalar_lea.vmem [#allocation6], %s828
        // Predicated region
        $region41: #{tpu_custom_call.1} parent=35 // pred_check
          %p830 = pneg %p134
        $region42: #{tpu_custom_call.1} parent=35 // pred_check_branch
          %832 = sbr.rel (%p830) target = $region44
        $region43: #{tpu_custom_call.1} parent=35 // pred_region
          %s833 = smul.u32 16, %s22
          %s835 = ssub.s32 4096, 4096
          %836 = vsyncadd %s826, %s835
          %s837 = smul.addr %s833, 2
          %s838 = smul.addr %s837, 128
          %s839 = scalar_lea.hbm %s4, %s838
          %s840 = sshll.u32 %s829, 4
          %s841 = int_to_ptr.vmem [resolvable:$true] %s840
          %846 = dma.vmem_to_hbm [thread:$0]  %s841, 4096, %s839, %s826, 256, 256, 16
        $region44: #{tpu_custom_call.1} parent=35 // pred_fallthru
          _
      $region36: #{tpu_custom_call.1} parent=5 // pred_fallthru
        _
      %p847 = scmp.le.s32.totalorder 2, %s17
      // Predicated region
      $region45: #{tpu_custom_call.1} parent=5 // pred_check
        %p848 = pneg %p847
      $region46: #{tpu_custom_call.1} parent=5 // pred_check_branch
        %850 = sbr.rel (%p848) target = $region48
      $region47: #{tpu_custom_call.1} parent=5 // pred_region
        %s851 = ssub.s32 %s17, 2
        // Predicated region
        $region49: #{tpu_custom_call.1} parent=47 // pred_check
          %p852 = pneg %p140
        $region50: #{tpu_custom_call.1} parent=47 // pred_check_branch
          %854 = sbr.rel (%p852) target = $region52
        $region51: #{tpu_custom_call.1} parent=47 // pred_region
          %s855 = sand.u32 %s125, 1
          %s856 = scalar_lea.sflag [#allocation5], %s855
          %s857 = sand.u32 %s125, 1
          %s858 = smul.addr %s857, 256
          %s859 = scalar_lea.vmem [#allocation6], %s858
          %860 = dma.done %s856, 4096
        $region52: #{tpu_custom_call.1} parent=47 // pred_fallthru
          _
      $region48: #{tpu_custom_call.1} parent=5 // pred_fallthru
        _
    $region6: #{tpu_custom_call.1} parent=1 // loop_footer
      %s21 = sadd.s32 1, %s17
    $region7: #{tpu_custom_call.1} parent=1 // loop_footer_branch
      %16 = sbr.rel target = $region3
    $region8: #{tpu_custom_call.1} parent=1 // loop_exit
      _
    %861 = vsyncpa [#allocation4], 1
    %s862 = scalar_lea.sflag [#allocation4], 1
    %863 = vsyncpa %s862, 1
    %864 = vsyncpa [#allocation5], 1
    %s865 = scalar_lea.sflag [#allocation5], 1
    %866 = vsyncpa %s865, 1

</llo_original>
